<compile_context>
chip_gen: v7x
topology: tpu7x:2x2x1
jax: 0.10.0
libtpu: 0.0.40
codegen_flags: <defaults>
</compile_context>

<pallas_src>
import jax
import jax.numpy as jnp
from jax.experimental import pallas as pl
from jax.experimental.pallas import tpu as pltpu


def _dwconv3x3_kernel(w_ref, b_ref, x_ref, o_ref, xpad_ref):
    # w_ref:    SMEM (3, 3) f32        -- shared 3x3 filter
    # b_ref:    SMEM (1,)   f32        -- shared bias
    # x_ref:    VMEM (H, W, TN)        -- channel-last input block (channels in lanes)
    # o_ref:    VMEM (H, W, TN)        -- output block
    # xpad_ref: VMEM (H+2, W+2, TN) f32 scratch holding the zero-halo'd block
    H, W, TN = o_ref.shape

    # Zero only the 1-pixel halo border (the interior is fully overwritten
    # below).  Done every grid step so correctness does not depend on which
    # TensorCore executes which grid index.
    zrow = jnp.zeros((1, W + 2, TN), jnp.float32)
    zcol = jnp.zeros((H + 2, 1, TN), jnp.float32)
    xpad_ref[0:1, :, :] = zrow
    xpad_ref[H + 1:H + 2, :, :] = zrow
    xpad_ref[:, 0:1, :] = zcol
    xpad_ref[:, W + 1:W + 2, :] = zcol

    # Copy the block into the interior, casting to f32 once (accum dtype).
    xpad_ref[1:H + 1, 1:W + 1, :] = x_ref[...].astype(jnp.float32)

    # 9 shifted taps accumulated on the VPU.  Channels sit in lanes, so every
    # tap is a full-lane-width slice; shifts are only on the spatial dims.
    acc = w_ref[0, 0] * xpad_ref[0:H, 0:W, :]
    for ki in range(3):
        for kj in range(3):
            if ki == 0 and kj == 0:
                continue
            acc = acc + w_ref[ki, kj] * xpad_ref[ki:ki + H, kj:kj + W, :]
    acc = acc + b_ref[0]
    o_ref[...] = acc.astype(o_ref.dtype)


def _choose_channel_block(n, h, w, itemsize):
    """Pick (tn, n_pad): channels per block (lane width) and padded channel count."""
    if n <= 128:
        return n, n                      # single block; lane dim == full axis
    plane_bytes = h * w * itemsize
    target = 2 * 1024 * 1024             # ~2 MiB per input block
    tn = (target // plane_bytes) // 128 * 128
    n_up128 = ((n + 127) // 128) * 128
    tn = int(max(128, min(tn, n_up128)))
    n_pad = ((n + tn - 1) // tn) * tn
    return tn, n_pad


def depthwise_clipseg_conv(x, weight, bias):
    """x: (B, C, H, W); weight: (3, 3); bias: (1,). Returns (B, C, H, W)."""
    B, C, H, W = x.shape
    N = B * C
    weight = jnp.asarray(weight, jnp.float32).reshape(3, 3)
    bias = jnp.asarray(bias, jnp.float32).reshape(1)

    # Channel-last: (H, W, B*C) puts the B*C axis in the lane dimension.
    xcl = jnp.transpose(x.reshape(N, H, W), (1, 2, 0))

    tn, n_pad = _choose_channel_block(N, H, W, x.dtype.itemsize)
    if n_pad != N:
        xcl = jnp.pad(xcl, ((0, 0), (0, 0), (0, n_pad - N)))

    grid = (n_pad // tn,)

    block_bytes = H * W * tn * x.dtype.itemsize
    scratch_bytes = (H + 2) * (W + 2) * tn * 4
    vmem_need = 4 * block_bytes + scratch_bytes       # double-buffered in+out + scratch
    vmem_limit = int(min(48 << 20, max(32 << 20, vmem_need + (8 << 20))))
    # TODO(synk): add spatial (H) tiling with halo exchange for very large
    # H*W planes whose per-128-channel block would not fit VMEM.

    out_cl = pl.pallas_call(
        _dwconv3x3_kernel,
        out_shape=jax.ShapeDtypeStruct((H, W, n_pad), x.dtype),
        grid=grid,
        in_specs=[
            pl.BlockSpec(memory_space=pltpu.MemorySpace.SMEM),    # weight (3,3)
            pl.BlockSpec(memory_space=pltpu.MemorySpace.SMEM),    # bias (1,)
            pl.BlockSpec((H, W, tn), lambda n: (0, 0, n)),
        ],
        out_specs=pl.BlockSpec((H, W, tn), lambda n: (0, 0, n)),
        scratch_shapes=[pltpu.VMEM((H + 2, W + 2, tn), jnp.float32)],
        compiler_params=pltpu.CompilerParams(
            dimension_semantics=("parallel",),
            vmem_limit_bytes=vmem_limit,
        ),
    )(weight, bias, xcl)

    out = jnp.transpose(out_cl[:, :, :N], (2, 0, 1)).reshape(B, C, H, W)
    return out


def _reference(x, weight, bias):
    """Pure-JAX reference: same shared 3x3 conv applied per channel."""
    B, C, H, W = x.shape
    lhs = x.reshape(B * C, 1, H, W)                     # NCHW, 1 input channel
    rhs = weight.reshape(1, 1, 3, 3)                    # OIHW
    out = jax.lax.conv_general_dilated(
        lhs, rhs, window_strides=(1, 1), padding=((1, 1), (1, 1)),
        dimension_numbers=("NCHW", "OIHW", "NCHW"))
    out = out + bias[0]
    return out.reshape(B, C, H, W)


if __name__ == "__main__":
    key = jax.random.PRNGKey(0)
    kx, kw, kb = jax.random.split(key, 3)

    B, C, H, W = 2, 4, 16, 16
    x = jax.random.normal(kx, (B, C, H, W), dtype=jnp.float32)

    # Deterministic parameter init mimicking nn.Conv2d(1, 1, 3) shapes:
    # weight (out=1, in=1, 3, 3) -> stored as (3, 3); bias (1,).
    fan_in = 1 * 3 * 3
    bound = 1.0 / (fan_in ** 0.5)
    weight = jax.random.uniform(kw, (3, 3), jnp.float32, -bound, bound)
    bias = jax.random.uniform(kb, (1,), jnp.float32, -bound, bound)

    out = depthwise_clipseg_conv(x, weight, bias)
    out = jax.block_until_ready(out)

    ref = _reference(x, weight, bias)
    assert out.shape == (B, C, H, W)
    assert jnp.allclose(out, ref, atol=1e-5, rtol=1e-5)

    print("KERNEL_OK")
</pallas_src>

<mosaic_0001>
module attributes {stable_mosaic.version = 11 : i64} {
  func.func @_dwconv3x3_kernel(%arg0: i32, %arg1: memref<3x3xf32, #tpu.memory_space<smem>>, %arg2: memref<1xf32, #tpu.memory_space<smem>>, %arg3: memref<16x16x8xf32, #tpu.memory_space<vmem>>, %arg4: memref<16x16x8xf32, #tpu.memory_space<vmem>>, %arg5: memref<18x18x8xf32, #tpu.memory_space<vmem>>) attributes {dimension_semantics = [#tpu.dimension_semantics<parallel>], iteration_bounds = array<i64: 1>, scalar_prefetch = 0 : i64, scratch_operands = 1 : i64, tpu.core_type = #tpu.core_type<tc>, window_params = [{transform_indices = @transform_0, window_bounds = array<i64: 3, 3>}, {transform_indices = @transform_1, window_bounds = array<i64: 1>}, {transform_indices = @transform_2, window_bounds = array<i64: 16, 16, 8>}, {transform_indices = @transform_3, window_bounds = array<i64: 16, 16, 8>}]} {
    %cst = arith.constant 0.000000e+00 : f32
    %0 = vector.broadcast %cst : f32 to vector<1x18x8xf32>
    %cst_0 = arith.constant 0.000000e+00 : f32
    %1 = vector.broadcast %cst_0 : f32 to vector<18x1x8xf32>
    %c0 = arith.constant 0 : index
    %c0_1 = arith.constant 0 : index
    %c0_2 = arith.constant 0 : index
    %2 = vector.load %arg5[%c0, %c0_1, %c0_2] : memref<18x18x8xf32, #tpu.memory_space<vmem>>, vector<1x18x8xf32>
    tpu.vector_store %arg5[%c0, %c0_1, %c0_2], %0 {strides = array<i32>} : memref<18x18x8xf32, #tpu.memory_space<vmem>>, vector<1x18x8xf32>,
    %c17 = arith.constant 17 : index
    %c0_3 = arith.constant 0 : index
    %c0_4 = arith.constant 0 : index
    %3 = vector.load %arg5[%c17, %c0_3, %c0_4] : memref<18x18x8xf32, #tpu.memory_space<vmem>>, vector<1x18x8xf32>
    tpu.vector_store %arg5[%c17, %c0_3, %c0_4], %0 {strides = array<i32>} : memref<18x18x8xf32, #tpu.memory_space<vmem>>, vector<1x18x8xf32>,
    %c0_5 = arith.constant 0 : index
    %c0_6 = arith.constant 0 : index
    %c0_7 = arith.constant 0 : index
    %4 = vector.load %arg5[%c0_5, %c0_6, %c0_7] : memref<18x18x8xf32, #tpu.memory_space<vmem>>, vector<18x1x8xf32>
    tpu.vector_store %arg5[%c0_5, %c0_6, %c0_7], %1 {strides = array<i32>} : memref<18x18x8xf32, #tpu.memory_space<vmem>>, vector<18x1x8xf32>,
    %c0_8 = arith.constant 0 : index
    %c17_9 = arith.constant 17 : index
    %c0_10 = arith.constant 0 : index
    %5 = vector.load %arg5[%c0_8, %c17_9, %c0_10] : memref<18x18x8xf32, #tpu.memory_space<vmem>>, vector<18x1x8xf32>
    tpu.vector_store %arg5[%c0_8, %c17_9, %c0_10], %1 {strides = array<i32>} : memref<18x18x8xf32, #tpu.memory_space<vmem>>, vector<18x1x8xf32>,
    %c0_11 = arith.constant 0 : index
    %c0_12 = arith.constant 0 : index
    %c0_13 = arith.constant 0 : index
    %6 = vector.load %arg3[%c0_11, %c0_12, %c0_13] : memref<16x16x8xf32, #tpu.memory_space<vmem>>, vector<16x16x8xf32>
    %c1 = arith.constant 1 : index
    %c1_14 = arith.constant 1 : index
    %c0_15 = arith.constant 0 : index
    %7 = vector.load %arg5[%c1, %c1_14, %c0_15] : memref<18x18x8xf32, #tpu.memory_space<vmem>>, vector<16x16x8xf32>
    tpu.vector_store %arg5[%c1, %c1_14, %c0_15], %6 {strides = array<i32>} : memref<18x18x8xf32, #tpu.memory_space<vmem>>, vector<16x16x8xf32>,
    %c0_16 = arith.constant 0 : index
    %c0_17 = arith.constant 0 : index
    %8 = memref.load %arg1[%c0_16, %c0_17] : memref<3x3xf32, #tpu.memory_space<smem>>
    %c0_18 = arith.constant 0 : index
    %c0_19 = arith.constant 0 : index
    %c0_20 = arith.constant 0 : index
    %9 = vector.load %arg5[%c0_18, %c0_19, %c0_20] : memref<18x18x8xf32, #tpu.memory_space<vmem>>, vector<16x16x8xf32>
    %10 = vector.broadcast %8 : f32 to vector<16x16x8xf32>
    %11 = arith.mulf %10, %9 : vector<16x16x8xf32>
    %c0_21 = arith.constant 0 : index
    %c1_22 = arith.constant 1 : index
    %12 = memref.load %arg1[%c0_21, %c1_22] : memref<3x3xf32, #tpu.memory_space<smem>>
    %c0_23 = arith.constant 0 : index
    %c1_24 = arith.constant 1 : index
    %c0_25 = arith.constant 0 : index
    %13 = vector.load %arg5[%c0_23, %c1_24, %c0_25] : memref<18x18x8xf32, #tpu.memory_space<vmem>>, vector<16x16x8xf32>
    %14 = vector.broadcast %12 : f32 to vector<16x16x8xf32>
    %15 = arith.mulf %14, %13 : vector<16x16x8xf32>
    %16 = arith.addf %11, %15 : vector<16x16x8xf32>
    %c0_26 = arith.constant 0 : index
    %c2 = arith.constant 2 : index
    %17 = memref.load %arg1[%c0_26, %c2] : memref<3x3xf32, #tpu.memory_space<smem>>
    %c0_27 = arith.constant 0 : index
    %c2_28 = arith.constant 2 : index
    %c0_29 = arith.constant 0 : index
    %18 = vector.load %arg5[%c0_27, %c2_28, %c0_29] : memref<18x18x8xf32, #tpu.memory_space<vmem>>, vector<16x16x8xf32>
    %19 = vector.broadcast %17 : f32 to vector<16x16x8xf32>
    %20 = arith.mulf %19, %18 : vector<16x16x8xf32>
    %21 = arith.addf %16, %20 : vector<16x16x8xf32>
    %c1_30 = arith.constant 1 : index
    %c0_31 = arith.constant 0 : index
    %22 = memref.load %arg1[%c1_30, %c0_31] : memref<3x3xf32, #tpu.memory_space<smem>>
    %c1_32 = arith.constant 1 : index
    %c0_33 = arith.constant 0 : index
    %c0_34 = arith.constant 0 : index
    %23 = vector.load %arg5[%c1_32, %c0_33, %c0_34] : memref<18x18x8xf32, #tpu.memory_space<vmem>>, vector<16x16x8xf32>
    %24 = vector.broadcast %22 : f32 to vector<16x16x8xf32>
    %25 = arith.mulf %24, %23 : vector<16x16x8xf32>
    %26 = arith.addf %21, %25 : vector<16x16x8xf32>
    %c1_35 = arith.constant 1 : index
    %c1_36 = arith.constant 1 : index
    %27 = memref.load %arg1[%c1_35, %c1_36] : memref<3x3xf32, #tpu.memory_space<smem>>
    %c1_37 = arith.constant 1 : index
    %c1_38 = arith.constant 1 : index
    %c0_39 = arith.constant 0 : index
    %28 = vector.load %arg5[%c1_37, %c1_38, %c0_39] : memref<18x18x8xf32, #tpu.memory_space<vmem>>, vector<16x16x8xf32>
    %29 = vector.broadcast %27 : f32 to vector<16x16x8xf32>
    %30 = arith.mulf %29, %28 : vector<16x16x8xf32>
    %31 = arith.addf %26, %30 : vector<16x16x8xf32>
    %c1_40 = arith.constant 1 : index
    %c2_41 = arith.constant 2 : index
    %32 = memref.load %arg1[%c1_40, %c2_41] : memref<3x3xf32, #tpu.memory_space<smem>>
    %c1_42 = arith.constant 1 : index
    %c2_43 = arith.constant 2 : index
    %c0_44 = arith.constant 0 : index
    %33 = vector.load %arg5[%c1_42, %c2_43, %c0_44] : memref<18x18x8xf32, #tpu.memory_space<vmem>>, vector<16x16x8xf32>
    %34 = vector.broadcast %32 : f32 to vector<16x16x8xf32>
    %35 = arith.mulf %34, %33 : vector<16x16x8xf32>
    %36 = arith.addf %31, %35 : vector<16x16x8xf32>
    %c2_45 = arith.constant 2 : index
    %c0_46 = arith.constant 0 : index
    %37 = memref.load %arg1[%c2_45, %c0_46] : memref<3x3xf32, #tpu.memory_space<smem>>
    %c2_47 = arith.constant 2 : index
    %c0_48 = arith.constant 0 : index
    %c0_49 = arith.constant 0 : index
    %38 = vector.load %arg5[%c2_47, %c0_48, %c0_49] : memref<18x18x8xf32, #tpu.memory_space<vmem>>, vector<16x16x8xf32>
    %39 = vector.broadcast %37 : f32 to vector<16x16x8xf32>
    %40 = arith.mulf %39, %38 : vector<16x16x8xf32>
    %41 = arith.addf %36, %40 : vector<16x16x8xf32>
    %c2_50 = arith.constant 2 : index
    %c1_51 = arith.constant 1 : index
    %42 = memref.load %arg1[%c2_50, %c1_51] : memref<3x3xf32, #tpu.memory_space<smem>>
    %c2_52 = arith.constant 2 : index
    %c1_53 = arith.constant 1 : index
    %c0_54 = arith.constant 0 : index
    %43 = vector.load %arg5[%c2_52, %c1_53, %c0_54] : memref<18x18x8xf32, #tpu.memory_space<vmem>>, vector<16x16x8xf32>
    %44 = vector.broadcast %42 : f32 to vector<16x16x8xf32>
    %45 = arith.mulf %44, %43 : vector<16x16x8xf32>
    %46 = arith.addf %41, %45 : vector<16x16x8xf32>
    %c2_55 = arith.constant 2 : index
    %c2_56 = arith.constant 2 : index
    %47 = memref.load %arg1[%c2_55, %c2_56] : memref<3x3xf32, #tpu.memory_space<smem>>
    %c2_57 = arith.constant 2 : index
    %c2_58 = arith.constant 2 : index
    %c0_59 = arith.constant 0 : index
    %48 = vector.load %arg5[%c2_57, %c2_58, %c0_59] : memref<18x18x8xf32, #tpu.memory_space<vmem>>, vector<16x16x8xf32>
    %49 = vector.broadcast %47 : f32 to vector<16x16x8xf32>
    %50 = arith.mulf %49, %48 : vector<16x16x8xf32>
    %51 = arith.addf %46, %50 : vector<16x16x8xf32>
    %c0_60 = arith.constant 0 : index
    %52 = memref.load %arg2[%c0_60] : memref<1xf32, #tpu.memory_space<smem>>
    %53 = vector.broadcast %52 : f32 to vector<16x16x8xf32>
    %54 = arith.addf %51, %53 : vector<16x16x8xf32>
    %c0_61 = arith.constant 0 : index
    %c0_62 = arith.constant 0 : index
    %c0_63 = arith.constant 0 : index
    %55 = vector.load %arg4[%c0_61, %c0_62, %c0_63] : memref<16x16x8xf32, #tpu.memory_space<vmem>>, vector<16x16x8xf32>
    tpu.vector_store %arg4[%c0_61, %c0_62, %c0_63], %54 {strides = array<i32>} : memref<16x16x8xf32, #tpu.memory_space<vmem>>, vector<16x16x8xf32>,
    return
  }
  func.func @transform_0(%arg0: i32) -> (i32, i32) {
    %c0_i32 = arith.constant 0 : i32
    %c0_i32_0 = arith.constant 0 : i32
    %c0_i32_1 = arith.constant 0 : i32
    return %c0_i32, %c0_i32_0 : i32, i32
  }
  func.func @transform_1(%arg0: i32) -> i32 {
    %c0_i32 = arith.constant 0 : i32
    %c0_i32_0 = arith.constant 0 : i32
    return %c0_i32 : i32
  }
  func.func @transform_2(%arg0: i32) -> (i32, i32, i32) {
    %c0_i32 = arith.constant 0 : i32
    %c0_i32_0 = arith.constant 0 : i32
    %c0_i32_1 = arith.constant 0 : i32
    return %c0_i32, %c0_i32_0, %arg0 : i32, i32, i32
  }
  func.func @transform_3(%arg0: i32) -> (i32, i32, i32) {
    %c0_i32 = arith.constant 0 : i32
    %c0_i32_0 = arith.constant 0 : i32
    %c0_i32_1 = arith.constant 0 : i32
    return %c0_i32, %c0_i32_0, %arg0 : i32, i32, i32
  }
}

</mosaic_0001>

<llo_original>
// kernel: tpu_custom_call.1
$region0: #{tpu_custom_call.1}
  #allocation0 [shape = 'u32[]', space=smem, size = 0x4, offset = 0x4, fixed_abs, tag = 'smem constant byte address 0x4 - core index']
  #allocation1 [shape = 'u32[144,128]{1,0:T(1,128)}', space=vmem, size = 0x12000, scoped, tag = 'internal scratch']
  #allocation2 [shape = 'f32[18,18,8]{2,1,0:T(8,128)}', space=vmem, size = 0x36000, scoped, tag = 'scratch operand']
  #allocation3 [shape = 'f32[1]{0:T(128)S(6)}', space=smem, size = 0x200, scoped, tag = 'scoped memory for tpu_custom_call.1']
  %s0 = inlined_call_operand.vmem [shape: f32[3,3], index: 0, kind: input, shape index: {}]
  %s1 = inlined_call_operand.<no memory space> [shape: f32[1], index: 1, kind: input, shape index: {}]
  %s2 = inlined_call_operand.vmem [shape: f32[16,16,8], index: 2, kind: input, shape index: {}]
  %s3 = inlined_call_operand.vmem [shape: f32[16,16,8], index: 3, kind: output, shape index: {}]
  %s4 = sld [smem:[#allocation0]]
  $region26: #{tpu_custom_call.1} parent=0
    _
  %s6 = ssub.s32 1, %s4
  %s7 = scalar_select 0, %s6, %s4
  %8 = sst [smem:[#allocation3]] %s1
  $region1: #{tpu_custom_call.1} parent=0
    #allocation4 [shape = 'u8[2048]{0}', space=smem, size = 0x800, scoped, tag = 'input window, operand 0, single buffered']
    #allocation5 [shape = 's32[1]{0}', space=sflag, size = 0x4, scoped, tag = 'scoped memory for tpu_custom_call.1']
    %9 = vsyncpa [#allocation5], 0
    // Predicated region
    $region2: #{tpu_custom_call.1} parent=1 // pred_check
      _
    $region3: #{tpu_custom_call.1} parent=1 // pred_check_branch
      %11 = sbr.rel (0) target = $region5
    $region4: #{tpu_custom_call.1} parent=1 // pred_region
      %s13 = ssub.s32 64, 64
      %14 = vsyncadd [#allocation5], %s13
      %s16 = sshll.u32 %s0, 4
      %s17 = int_to_ptr.vmem [resolvable:$true] %s16
      %19 = dma.vmem_to_smem %s17, 64, [#allocation4], [#allocation5]
    $region5: #{tpu_custom_call.1} parent=1 // pred_fallthru
      _
    // Predicated region
    $region6: #{tpu_custom_call.1} parent=1 // pred_check
      _
    $region7: #{tpu_custom_call.1} parent=1 // pred_check_branch
      %21 = sbr.rel (0) target = $region9
    $region8: #{tpu_custom_call.1} parent=1 // pred_region
      _
    $region9: #{tpu_custom_call.1} parent=1 // pred_fallthru
      _
    // Predicated region
    $region10: #{tpu_custom_call.1} parent=1 // pred_check
      _
    $region11: #{tpu_custom_call.1} parent=1 // pred_check_branch
      %23 = sbr.rel (0) target = $region13
    $region12: #{tpu_custom_call.1} parent=1 // pred_region
      _
    $region13: #{tpu_custom_call.1} parent=1 // pred_fallthru
      _
    // Predicated region
    $region14: #{tpu_custom_call.1} parent=1 // pred_check
      _
    $region15: #{tpu_custom_call.1} parent=1 // pred_check_branch
      %25 = sbr.rel (0) target = $region17
    $region16: #{tpu_custom_call.1} parent=1 // pred_region
      %26 = dma.done [#allocation5], 64
    $region17: #{tpu_custom_call.1} parent=1 // pred_fallthru
      _
    %27 = sfence
    %vm28 = vcmask 64512
    %29 = vst.msk [vmem:[#allocation2] sm:$0xff] %vm28, 0.0
    %30 = vst.msk [vmem:[#allocation2 + $0x8] sm:$0xff] %vm28, 0.0
    %vm31 = vcmask 58368
    %32 = vst.msk [vmem:[#allocation2 + $0x10] sm:$0x3] %vm31, 0.0
    %s33 = scalar_lea.vmem [#allocation2], 408
    %34 = vst.msk [vmem:[%s33] sm:$0xff] %vm28, 0.0
    %35 = vst.msk [vmem:[%s33 + $0x8] sm:$0xff] %vm28, 0.0
    %36 = vst.msk [vmem:[%s33 + $0x10] sm:$0x3] %vm31, 0.0
    %vm37 = vcmask 57344
    %38 = vst.msk [vmem:[#allocation2] sm:$0x1] %vm37, 0.0
    %39 = vst.msk [vmem:[#allocation2 + $0x18] sm:$0x1] %vm37, 0.0
    %40 = vst.msk [vmem:[#allocation2 + $0x30] sm:$0x1] %vm37, 0.0
    %41 = vst.msk [vmem:[#allocation2 + $0x48] sm:$0x1] %vm37, 0.0
    %42 = vst.msk [vmem:[#allocation2 + $0x60] sm:$0x1] %vm37, 0.0
    %43 = vst.msk [vmem:[#allocation2 + $0x78] sm:$0x1] %vm37, 0.0
    %44 = vst.msk [vmem:[#allocation2 + $0x90] sm:$0x1] %vm37, 0.0
    %45 = vst.msk [vmem:[#allocation2 + $0xa8] sm:$0x1] %vm37, 0.0
    %46 = vst.msk [vmem:[#allocation2 + $0xc0] sm:$0x1] %vm37, 0.0
    %47 = vst.msk [vmem:[#allocation2 + $0xd8] sm:$0x1] %vm37, 0.0
    %48 = vst.msk [vmem:[#allocation2 + $0xf0] sm:$0x1] %vm37, 0.0
    %49 = vst.msk [vmem:[#allocation2 + $0x108] sm:$0x1] %vm37, 0.0
    %50 = vst.msk [vmem:[#allocation2 + $0x120] sm:$0x1] %vm37, 0.0
    %51 = vst.msk [vmem:[#allocation2 + $0x138] sm:$0x1] %vm37, 0.0
    %52 = vst.msk [vmem:[#allocation2 + $0x150] sm:$0x1] %vm37, 0.0
    %53 = vst.msk [vmem:[#allocation2 + $0x168] sm:$0x1] %vm37, 0.0
    %54 = vst.msk [vmem:[#allocation2 + $0x180] sm:$0x1] %vm37, 0.0
    %55 = vst.msk [vmem:[#allocation2 + $0x198] sm:$0x1] %vm37, 0.0
    %56 = vst.msk [vmem:[#allocation2 + $0x11] sm:$0x1] %vm37, 0.0
    %57 = vst.msk [vmem:[#allocation2 + $0x29] sm:$0x1] %vm37, 0.0
    %58 = vst.msk [vmem:[#allocation2 + $0x41] sm:$0x1] %vm37, 0.0
    %59 = vst.msk [vmem:[#allocation2 + $0x59] sm:$0x1] %vm37, 0.0
    %60 = vst.msk [vmem:[#allocation2 + $0x71] sm:$0x1] %vm37, 0.0
    %61 = vst.msk [vmem:[#allocation2 + $0x89] sm:$0x1] %vm37, 0.0
    %62 = vst.msk [vmem:[#allocation2 + $0xa1] sm:$0x1] %vm37, 0.0
    %63 = vst.msk [vmem:[#allocation2 + $0xb9] sm:$0x1] %vm37, 0.0
    %64 = vst.msk [vmem:[#allocation2 + $0xd1] sm:$0x1] %vm37, 0.0
    %65 = vst.msk [vmem:[#allocation2 + $0xe9] sm:$0x1] %vm37, 0.0
    %66 = vst.msk [vmem:[#allocation2 + $0x101] sm:$0x1] %vm37, 0.0
    %67 = vst.msk [vmem:[#allocation2 + $0x119] sm:$0x1] %vm37, 0.0
    %68 = vst.msk [vmem:[#allocation2 + $0x131] sm:$0x1] %vm37, 0.0
    %69 = vst.msk [vmem:[#allocation2 + $0x149] sm:$0x1] %vm37, 0.0
    %70 = vst.msk [vmem:[#allocation2 + $0x161] sm:$0x1] %vm37, 0.0
    %71 = vst.msk [vmem:[#allocation2 + $0x179] sm:$0x1] %vm37, 0.0
    %72 = vst.msk [vmem:[#allocation2 + $0x191] sm:$0x1] %vm37, 0.0
    %73 = vst.msk [vmem:[#allocation2 + $0x1a9] sm:$0x1] %vm37, 0.0
    %v74 = vld [vmem:[%s2] sm:$0xff]
    %v75 = vld [vmem:[%s2 + $0x8] sm:$0xff]
    %v76 = vld [vmem:[%s2 + $0x10] sm:$0xff]
    %v77 = vld [vmem:[%s2 + $0x18] sm:$0xff]
    %v78 = vld [vmem:[%s2 + $0x20] sm:$0xff]
    %v79 = vld [vmem:[%s2 + $0x28] sm:$0xff]
    %v80 = vld [vmem:[%s2 + $0x30] sm:$0xff]
    %v81 = vld [vmem:[%s2 + $0x38] sm:$0xff]
    %v82 = vld [vmem:[%s2 + $0x40] sm:$0xff]
    %v83 = vld [vmem:[%s2 + $0x48] sm:$0xff]
    %v84 = vld [vmem:[%s2 + $0x50] sm:$0xff]
    %v85 = vld [vmem:[%s2 + $0x58] sm:$0xff]
    %v86 = vld [vmem:[%s2 + $0x60] sm:$0xff]
    %v87 = vld [vmem:[%s2 + $0x68] sm:$0xff]
    %v88 = vld [vmem:[%s2 + $0x70] sm:$0xff]
    %v89 = vld [vmem:[%s2 + $0x78] sm:$0xff]
    %v90 = vld [vmem:[%s2 + $0x80] sm:$0xff]
    %v91 = vld [vmem:[%s2 + $0x88] sm:$0xff]
    %v92 = vld [vmem:[%s2 + $0x90] sm:$0xff]
    %v93 = vld [vmem:[%s2 + $0x98] sm:$0xff]
    %v94 = vld [vmem:[%s2 + $0xa0] sm:$0xff]
    %v95 = vld [vmem:[%s2 + $0xa8] sm:$0xff]
    %v96 = vld [vmem:[%s2 + $0xb0] sm:$0xff]
    %v97 = vld [vmem:[%s2 + $0xb8] sm:$0xff]
    %v98 = vld [vmem:[%s2 + $0xc0] sm:$0xff]
    %v99 = vld [vmem:[%s2 + $0xc8] sm:$0xff]
    %v100 = vld [vmem:[%s2 + $0xd0] sm:$0xff]
    %v101 = vld [vmem:[%s2 + $0xd8] sm:$0xff]
    %v102 = vld [vmem:[%s2 + $0xe0] sm:$0xff]
    %v103 = vld [vmem:[%s2 + $0xe8] sm:$0xff]
    %v104 = vld [vmem:[%s2 + $0xf0] sm:$0xff]
    %v105 = vld [vmem:[%s2 + $0xf8] sm:$0xff]
    %s106 = scalar_lea.vmem [#allocation2], 24
    %107 = vst.msk [vmem:[%s106 + $0x1] sm:$0xff] %vm28, %v74
    %108 = vst.msk [vmem:[%s106 + $0x9] sm:$0xff] %vm28, %v75
    %109 = vst.msk [vmem:[%s106 + $0x19] sm:$0xff] %vm28, %v76
    %110 = vst.msk [vmem:[%s106 + $0x21] sm:$0xff] %vm28, %v77
    %111 = vst.msk [vmem:[%s106 + $0x31] sm:$0xff] %vm28, %v78
    %112 = vst.msk [vmem:[%s106 + $0x39] sm:$0xff] %vm28, %v79
    %113 = vst.msk [vmem:[%s106 + $0x49] sm:$0xff] %vm28, %v80
    %114 = vst.msk [vmem:[%s106 + $0x51] sm:$0xff] %vm28, %v81
    %115 = vst.msk [vmem:[%s106 + $0x61] sm:$0xff] %vm28, %v82
    %116 = vst.msk [vmem:[%s106 + $0x69] sm:$0xff] %vm28, %v83
    %117 = vst.msk [vmem:[%s106 + $0x79] sm:$0xff] %vm28, %v84
    %118 = vst.msk [vmem:[%s106 + $0x81] sm:$0xff] %vm28, %v85
    %119 = vst.msk [vmem:[%s106 + $0x91] sm:$0xff] %vm28, %v86
    %120 = vst.msk [vmem:[%s106 + $0x99] sm:$0xff] %vm28, %v87
    %121 = vst.msk [vmem:[%s106 + $0xa9] sm:$0xff] %vm28, %v88
    %122 = vst.msk [vmem:[%s106 + $0xb1] sm:$0xff] %vm28, %v89
    %123 = vst.msk [vmem:[%s106 + $0xc1] sm:$0xff] %vm28, %v90
    %124 = vst.msk [vmem:[%s106 + $0xc9] sm:$0xff] %vm28, %v91
    %125 = vst.msk [vmem:[%s106 + $0xd9] sm:$0xff] %vm28, %v92
    %126 = vst.msk [vmem:[%s106 + $0xe1] sm:$0xff] %vm28, %v93
    %127 = vst.msk [vmem:[%s106 + $0xf1] sm:$0xff] %vm28, %v94
    %128 = vst.msk [vmem:[%s106 + $0xf9] sm:$0xff] %vm28, %v95
    %129 = vst.msk [vmem:[%s106 + $0x109] sm:$0xff] %vm28, %v96
    %130 = vst.msk [vmem:[%s106 + $0x111] sm:$0xff] %vm28, %v97
    %131 = vst.msk [vmem:[%s106 + $0x121] sm:$0xff] %vm28, %v98
    %132 = vst.msk [vmem:[%s106 + $0x129] sm:$0xff] %vm28, %v99
    %133 = vst.msk [vmem:[%s106 + $0x139] sm:$0xff] %vm28, %v100
    %134 = vst.msk [vmem:[%s106 + $0x141] sm:$0xff] %vm28, %v101
    %135 = vst.msk [vmem:[%s106 + $0x151] sm:$0xff] %vm28, %v102
    %136 = vst.msk [vmem:[%s106 + $0x159] sm:$0xff] %vm28, %v103
    %137 = vst.msk [vmem:[%s106 + $0x169] sm:$0xff] %vm28, %v104
    %138 = vst.msk [vmem:[%s106 + $0x171] sm:$0xff] %vm28, %v105
    %s139 = sld [smem:[#allocation4]]
    %v140 = vld [vmem:[#allocation2] sm:$0xff]
    %v141 = vld [vmem:[#allocation2 + $0x8] sm:$0xff]
    %v142 = vld [vmem:[#allocation2 + $0x18] sm:$0xff]
    %v143 = vld [vmem:[#allocation2 + $0x20] sm:$0xff]
    %v144 = vld [vmem:[#allocation2 + $0x30] sm:$0xff]
    %v145 = vld [vmem:[#allocation2 + $0x38] sm:$0xff]
    %v146 = vld [vmem:[#allocation2 + $0x48] sm:$0xff]
    %v147 = vld [vmem:[#allocation2 + $0x50] sm:$0xff]
    %v148 = vld [vmem:[#allocation2 + $0x60] sm:$0xff]
    %v149 = vld [vmem:[#allocation2 + $0x68] sm:$0xff]
    %v150 = vld [vmem:[#allocation2 + $0x78] sm:$0xff]
    %v151 = vld [vmem:[#allocation2 + $0x80] sm:$0xff]
    %v152 = vld [vmem:[#allocation2 + $0x90] sm:$0xff]
    %v153 = vld [vmem:[#allocation2 + $0x98] sm:$0xff]
    %v154 = vld [vmem:[#allocation2 + $0xa8] sm:$0xff]
    %v155 = vld [vmem:[#allocation2 + $0xb0] sm:$0xff]
    %v156 = vld [vmem:[#allocation2 + $0xc0] sm:$0xff]
    %v157 = vld [vmem:[#allocation2 + $0xc8] sm:$0xff]
    %v158 = vld [vmem:[#allocation2 + $0xd8] sm:$0xff]
    %v159 = vld [vmem:[#allocation2 + $0xe0] sm:$0xff]
    %v160 = vld [vmem:[#allocation2 + $0xf0] sm:$0xff]
    %v161 = vld [vmem:[#allocation2 + $0xf8] sm:$0xff]
    %v162 = vld [vmem:[#allocation2 + $0x108] sm:$0xff]
    %v163 = vld [vmem:[#allocation2 + $0x110] sm:$0xff]
    %v164 = vld [vmem:[#allocation2 + $0x120] sm:$0xff]
    %v165 = vld [vmem:[#allocation2 + $0x128] sm:$0xff]
    %v166 = vld [vmem:[#allocation2 + $0x138] sm:$0xff]
    %v167 = vld [vmem:[#allocation2 + $0x140] sm:$0xff]
    %v168 = vld [vmem:[#allocation2 + $0x150] sm:$0xff]
    %v169 = vld [vmem:[#allocation2 + $0x158] sm:$0xff]
    %v170 = vld [vmem:[#allocation2 + $0x168] sm:$0xff]
    %v171 = vld [vmem:[#allocation2 + $0x170] sm:$0xff]
    %v172 = vstv %s139
    %v173 = vmul.f32 %v172, %v140
    %v174 = vmul.f32 %v172, %v141
    %v175 = vmul.f32 %v172, %v142
    %v176 = vmul.f32 %v172, %v143
    %v177 = vmul.f32 %v172, %v144
    %v178 = vmul.f32 %v172, %v145
    %v179 = vmul.f32 %v172, %v146
    %v180 = vmul.f32 %v172, %v147
    %v181 = vmul.f32 %v172, %v148
    %v182 = vmul.f32 %v172, %v149
    %v183 = vmul.f32 %v172, %v150
    %v184 = vmul.f32 %v172, %v151
    %v185 = vmul.f32 %v172, %v152
    %v186 = vmul.f32 %v172, %v153
    %v187 = vmul.f32 %v172, %v154
    %v188 = vmul.f32 %v172, %v155
    %v189 = vmul.f32 %v172, %v156
    %v190 = vmul.f32 %v172, %v157
    %v191 = vmul.f32 %v172, %v158
    %v192 = vmul.f32 %v172, %v159
    %v193 = vmul.f32 %v172, %v160
    %v194 = vmul.f32 %v172, %v161
    %v195 = vmul.f32 %v172, %v162
    %v196 = vmul.f32 %v172, %v163
    %v197 = vmul.f32 %v172, %v164
    %v198 = vmul.f32 %v172, %v165
    %v199 = vmul.f32 %v172, %v166
    %v200 = vmul.f32 %v172, %v167
    %v201 = vmul.f32 %v172, %v168
    %v202 = vmul.f32 %v172, %v169
    %v203 = vmul.f32 %v172, %v170
    %v204 = vmul.f32 %v172, %v171
    %s205 = sld [smem:[#allocation4 + $0x1]]
    %v206 = vld [vmem:[#allocation2 + $0x1] sm:$0xff]
    %v207 = vld [vmem:[#allocation2 + $0x9] sm:$0xff]
    %v208 = vld [vmem:[#allocation2 + $0x19] sm:$0xff]
    %v209 = vld [vmem:[#allocation2 + $0x21] sm:$0xff]
    %v210 = vld [vmem:[#allocation2 + $0x31] sm:$0xff]
    %v211 = vld [vmem:[#allocation2 + $0x39] sm:$0xff]
    %v212 = vld [vmem:[#allocation2 + $0x49] sm:$0xff]
    %v213 = vld [vmem:[#allocation2 + $0x51] sm:$0xff]
    %v214 = vld [vmem:[#allocation2 + $0x61] sm:$0xff]
    %v215 = vld [vmem:[#allocation2 + $0x69] sm:$0xff]
    %v216 = vld [vmem:[#allocation2 + $0x79] sm:$0xff]
    %v217 = vld [vmem:[#allocation2 + $0x81] sm:$0xff]
    %v218 = vld [vmem:[#allocation2 + $0x91] sm:$0xff]
    %v219 = vld [vmem:[#allocation2 + $0x99] sm:$0xff]
    %v220 = vld [vmem:[#allocation2 + $0xa9] sm:$0xff]
    %v221 = vld [vmem:[#allocation2 + $0xb1] sm:$0xff]
    %v222 = vld [vmem:[#allocation2 + $0xc1] sm:$0xff]
    %v223 = vld [vmem:[#allocation2 + $0xc9] sm:$0xff]
    %v224 = vld [vmem:[#allocation2 + $0xd9] sm:$0xff]
    %v225 = vld [vmem:[#allocation2 + $0xe1] sm:$0xff]
    %v226 = vld [vmem:[#allocation2 + $0xf1] sm:$0xff]
    %v227 = vld [vmem:[#allocation2 + $0xf9] sm:$0xff]
    %v228 = vld [vmem:[#allocation2 + $0x109] sm:$0xff]
    %v229 = vld [vmem:[#allocation2 + $0x111] sm:$0xff]
    %v230 = vld [vmem:[#allocation2 + $0x121] sm:$0xff]
    %v231 = vld [vmem:[#allocation2 + $0x129] sm:$0xff]
    %v232 = vld [vmem:[#allocation2 + $0x139] sm:$0xff]
    %v233 = vld [vmem:[#allocation2 + $0x141] sm:$0xff]
    %v234 = vld [vmem:[#allocation2 + $0x151] sm:$0xff]
    %v235 = vld [vmem:[#allocation2 + $0x159] sm:$0xff]
    %v236 = vld [vmem:[#allocation2 + $0x169] sm:$0xff]
    %v237 = vld [vmem:[#allocation2 + $0x171] sm:$0xff]
    %v238 = vstv %s205
    %v239 = vmul.f32 %v238, %v206
    %v240 = vmul.f32 %v238, %v207
    %v241 = vmul.f32 %v238, %v208
    %v242 = vmul.f32 %v238, %v209
    %v243 = vmul.f32 %v238, %v210
    %v244 = vmul.f32 %v238, %v211
    %v245 = vmul.f32 %v238, %v212
    %v246 = vmul.f32 %v238, %v213
    %v247 = vmul.f32 %v238, %v214
    %v248 = vmul.f32 %v238, %v215
    %v249 = vmul.f32 %v238, %v216
    %v250 = vmul.f32 %v238, %v217
    %v251 = vmul.f32 %v238, %v218
    %v252 = vmul.f32 %v238, %v219
    %v253 = vmul.f32 %v238, %v220
    %v254 = vmul.f32 %v238, %v221
    %v255 = vmul.f32 %v238, %v222
    %v256 = vmul.f32 %v238, %v223
    %v257 = vmul.f32 %v238, %v224
    %v258 = vmul.f32 %v238, %v225
    %v259 = vmul.f32 %v238, %v226
    %v260 = vmul.f32 %v238, %v227
    %v261 = vmul.f32 %v238, %v228
    %v262 = vmul.f32 %v238, %v229
    %v263 = vmul.f32 %v238, %v230
    %v264 = vmul.f32 %v238, %v231
    %v265 = vmul.f32 %v238, %v232
    %v266 = vmul.f32 %v238, %v233
    %v267 = vmul.f32 %v238, %v234
    %v268 = vmul.f32 %v238, %v235
    %v269 = vmul.f32 %v238, %v236
    %v270 = vmul.f32 %v238, %v237
    %v271 = vadd.f32 %v173, %v239
    %v272 = vadd.f32 %v174, %v240
    %v273 = vadd.f32 %v175, %v241
    %v274 = vadd.f32 %v176, %v242
    %v275 = vadd.f32 %v177, %v243
    %v276 = vadd.f32 %v178, %v244
    %v277 = vadd.f32 %v179, %v245
    %v278 = vadd.f32 %v180, %v246
    %v279 = vadd.f32 %v181, %v247
    %v280 = vadd.f32 %v182, %v248
    %v281 = vadd.f32 %v183, %v249
    %v282 = vadd.f32 %v184, %v250
    %v283 = vadd.f32 %v185, %v251
    %v284 = vadd.f32 %v186, %v252
    %v285 = vadd.f32 %v187, %v253
    %v286 = vadd.f32 %v188, %v254
    %v287 = vadd.f32 %v189, %v255
    %v288 = vadd.f32 %v190, %v256
    %v289 = vadd.f32 %v191, %v257
    %v290 = vadd.f32 %v192, %v258
    %v291 = vadd.f32 %v193, %v259
    %v292 = vadd.f32 %v194, %v260
    %v293 = vadd.f32 %v195, %v261
    %v294 = vadd.f32 %v196, %v262
    %v295 = vadd.f32 %v197, %v263
    %v296 = vadd.f32 %v198, %v264
    %v297 = vadd.f32 %v199, %v265
    %v298 = vadd.f32 %v200, %v266
    %v299 = vadd.f32 %v201, %v267
    %v300 = vadd.f32 %v202, %v268
    %v301 = vadd.f32 %v203, %v269
    %v302 = vadd.f32 %v204, %v270
    %s303 = sld [smem:[#allocation4 + $0x2]]
    %v304 = vld [vmem:[#allocation2 + $0x2] sm:$0xff]
    %v305 = vld [vmem:[#allocation2 + $0xa] sm:$0xff]
    %v306 = vld [vmem:[#allocation2 + $0x1a] sm:$0xff]
    %v307 = vld [vmem:[#allocation2 + $0x22] sm:$0xff]
    %v308 = vld [vmem:[#allocation2 + $0x32] sm:$0xff]
    %v309 = vld [vmem:[#allocation2 + $0x3a] sm:$0xff]
    %v310 = vld [vmem:[#allocation2 + $0x4a] sm:$0xff]
    %v311 = vld [vmem:[#allocation2 + $0x52] sm:$0xff]
    %v312 = vld [vmem:[#allocation2 + $0x62] sm:$0xff]
    %v313 = vld [vmem:[#allocation2 + $0x6a] sm:$0xff]
    %v314 = vld [vmem:[#allocation2 + $0x7a] sm:$0xff]
    %v315 = vld [vmem:[#allocation2 + $0x82] sm:$0xff]
    %v316 = vld [vmem:[#allocation2 + $0x92] sm:$0xff]
    %v317 = vld [vmem:[#allocation2 + $0x9a] sm:$0xff]
    %v318 = vld [vmem:[#allocation2 + $0xaa] sm:$0xff]
    %v319 = vld [vmem:[#allocation2 + $0xb2] sm:$0xff]
    %v320 = vld [vmem:[#allocation2 + $0xc2] sm:$0xff]
    %v321 = vld [vmem:[#allocation2 + $0xca] sm:$0xff]
    %v322 = vld [vmem:[#allocation2 + $0xda] sm:$0xff]
    %v323 = vld [vmem:[#allocation2 + $0xe2] sm:$0xff]
    %v324 = vld [vmem:[#allocation2 + $0xf2] sm:$0xff]
    %v325 = vld [vmem:[#allocation2 + $0xfa] sm:$0xff]
    %v326 = vld [vmem:[#allocation2 + $0x10a] sm:$0xff]
    %v327 = vld [vmem:[#allocation2 + $0x112] sm:$0xff]
    %v328 = vld [vmem:[#allocation2 + $0x122] sm:$0xff]
    %v329 = vld [vmem:[#allocation2 + $0x12a] sm:$0xff]
    %v330 = vld [vmem:[#allocation2 + $0x13a] sm:$0xff]
    %v331 = vld [vmem:[#allocation2 + $0x142] sm:$0xff]
    %v332 = vld [vmem:[#allocation2 + $0x152] sm:$0xff]
    %v333 = vld [vmem:[#allocation2 + $0x15a] sm:$0xff]
    %v334 = vld [vmem:[#allocation2 + $0x16a] sm:$0xff]
    %v335 = vld [vmem:[#allocation2 + $0x172] sm:$0xff]
    %v336 = vstv %s303
    %v337 = vmul.f32 %v336, %v304
    %v338 = vmul.f32 %v336, %v305
    %v339 = vmul.f32 %v336, %v306
    %v340 = vmul.f32 %v336, %v307
    %v341 = vmul.f32 %v336, %v308
    %v342 = vmul.f32 %v336, %v309
    %v343 = vmul.f32 %v336, %v310
    %v344 = vmul.f32 %v336, %v311
    %v345 = vmul.f32 %v336, %v312
    %v346 = vmul.f32 %v336, %v313
    %v347 = vmul.f32 %v336, %v314
    %v348 = vmul.f32 %v336, %v315
    %v349 = vmul.f32 %v336, %v316
    %v350 = vmul.f32 %v336, %v317
    %v351 = vmul.f32 %v336, %v318
    %v352 = vmul.f32 %v336, %v319
    %v353 = vmul.f32 %v336, %v320
    %v354 = vmul.f32 %v336, %v321
    %v355 = vmul.f32 %v336, %v322
    %v356 = vmul.f32 %v336, %v323
    %v357 = vmul.f32 %v336, %v324
    %v358 = vmul.f32 %v336, %v325
    %v359 = vmul.f32 %v336, %v326
    %v360 = vmul.f32 %v336, %v327
    %v361 = vmul.f32 %v336, %v328
    %v362 = vmul.f32 %v336, %v329
    %v363 = vmul.f32 %v336, %v330
    %v364 = vmul.f32 %v336, %v331
    %v365 = vmul.f32 %v336, %v332
    %v366 = vmul.f32 %v336, %v333
    %v367 = vmul.f32 %v336, %v334
    %v368 = vmul.f32 %v336, %v335
    %v369 = vadd.f32 %v271, %v337
    %v370 = vadd.f32 %v272, %v338
    %v371 = vadd.f32 %v273, %v339
    %v372 = vadd.f32 %v274, %v340
    %v373 = vadd.f32 %v275, %v341
    %v374 = vadd.f32 %v276, %v342
    %v375 = vadd.f32 %v277, %v343
    %v376 = vadd.f32 %v278, %v344
    %v377 = vadd.f32 %v279, %v345
    %v378 = vadd.f32 %v280, %v346
    %v379 = vadd.f32 %v281, %v347
    %v380 = vadd.f32 %v282, %v348
    %v381 = vadd.f32 %v283, %v349
    %v382 = vadd.f32 %v284, %v350
    %v383 = vadd.f32 %v285, %v351
    %v384 = vadd.f32 %v286, %v352
    %v385 = vadd.f32 %v287, %v353
    %v386 = vadd.f32 %v288, %v354
    %v387 = vadd.f32 %v289, %v355
    %v388 = vadd.f32 %v290, %v356
    %v389 = vadd.f32 %v291, %v357
    %v390 = vadd.f32 %v292, %v358
    %v391 = vadd.f32 %v293, %v359
    %v392 = vadd.f32 %v294, %v360
    %v393 = vadd.f32 %v295, %v361
    %v394 = vadd.f32 %v296, %v362
    %v395 = vadd.f32 %v297, %v363
    %v396 = vadd.f32 %v298, %v364
    %v397 = vadd.f32 %v299, %v365
    %v398 = vadd.f32 %v300, %v366
    %v399 = vadd.f32 %v301, %v367
    %v400 = vadd.f32 %v302, %v368
    %s401 = sld [smem:[#allocation4 + $0x80]]
    %v402 = vld [vmem:[%s106] sm:$0xff]
    %v403 = vld [vmem:[%s106 + $0x8] sm:$0xff]
    %v404 = vld [vmem:[%s106 + $0x18] sm:$0xff]
    %v405 = vld [vmem:[%s106 + $0x20] sm:$0xff]
    %v406 = vld [vmem:[%s106 + $0x30] sm:$0xff]
    %v407 = vld [vmem:[%s106 + $0x38] sm:$0xff]
    %v408 = vld [vmem:[%s106 + $0x48] sm:$0xff]
    %v409 = vld [vmem:[%s106 + $0x50] sm:$0xff]
    %v410 = vld [vmem:[%s106 + $0x60] sm:$0xff]
    %v411 = vld [vmem:[%s106 + $0x68] sm:$0xff]
    %v412 = vld [vmem:[%s106 + $0x78] sm:$0xff]
    %v413 = vld [vmem:[%s106 + $0x80] sm:$0xff]
    %v414 = vld [vmem:[%s106 + $0x90] sm:$0xff]
    %v415 = vld [vmem:[%s106 + $0x98] sm:$0xff]
    %v416 = vld [vmem:[%s106 + $0xa8] sm:$0xff]
    %v417 = vld [vmem:[%s106 + $0xb0] sm:$0xff]
    %v418 = vld [vmem:[%s106 + $0xc0] sm:$0xff]
    %v419 = vld [vmem:[%s106 + $0xc8] sm:$0xff]
    %v420 = vld [vmem:[%s106 + $0xd8] sm:$0xff]
    %v421 = vld [vmem:[%s106 + $0xe0] sm:$0xff]
    %v422 = vld [vmem:[%s106 + $0xf0] sm:$0xff]
    %v423 = vld [vmem:[%s106 + $0xf8] sm:$0xff]
    %v424 = vld [vmem:[%s106 + $0x108] sm:$0xff]
    %v425 = vld [vmem:[%s106 + $0x110] sm:$0xff]
    %v426 = vld [vmem:[%s106 + $0x120] sm:$0xff]
    %v427 = vld [vmem:[%s106 + $0x128] sm:$0xff]
    %v428 = vld [vmem:[%s106 + $0x138] sm:$0xff]
    %v429 = vld [vmem:[%s106 + $0x140] sm:$0xff]
    %v430 = vld [vmem:[%s106 + $0x150] sm:$0xff]
    %v431 = vld [vmem:[%s106 + $0x158] sm:$0xff]
    %v432 = vld [vmem:[%s106 + $0x168] sm:$0xff]
    %v433 = vld [vmem:[%s106 + $0x170] sm:$0xff]
    %v434 = vstv %s401
    %v435 = vmul.f32 %v434, %v402
    %v436 = vmul.f32 %v434, %v403
    %v437 = vmul.f32 %v434, %v404
    %v438 = vmul.f32 %v434, %v405
    %v439 = vmul.f32 %v434, %v406
    %v440 = vmul.f32 %v434, %v407
    %v441 = vmul.f32 %v434, %v408
    %v442 = vmul.f32 %v434, %v409
    %v443 = vmul.f32 %v434, %v410
    %v444 = vmul.f32 %v434, %v411
    %v445 = vmul.f32 %v434, %v412
    %v446 = vmul.f32 %v434, %v413
    %v447 = vmul.f32 %v434, %v414
    %v448 = vmul.f32 %v434, %v415
    %v449 = vmul.f32 %v434, %v416
    %v450 = vmul.f32 %v434, %v417
    %v451 = vmul.f32 %v434, %v418
    %v452 = vmul.f32 %v434, %v419
    %v453 = vmul.f32 %v434, %v420
    %v454 = vmul.f32 %v434, %v421
    %v455 = vmul.f32 %v434, %v422
    %v456 = vmul.f32 %v434, %v423
    %v457 = vmul.f32 %v434, %v424
    %v458 = vmul.f32 %v434, %v425
    %v459 = vmul.f32 %v434, %v426
    %v460 = vmul.f32 %v434, %v427
    %v461 = vmul.f32 %v434, %v428
    %v462 = vmul.f32 %v434, %v429
    %v463 = vmul.f32 %v434, %v430
    %v464 = vmul.f32 %v434, %v431
    %v465 = vmul.f32 %v434, %v432
    %v466 = vmul.f32 %v434, %v433
    %v467 = vadd.f32 %v369, %v435
    %v468 = vadd.f32 %v370, %v436
    %v469 = vadd.f32 %v371, %v437
    %v470 = vadd.f32 %v372, %v438
    %v471 = vadd.f32 %v373, %v439
    %v472 = vadd.f32 %v374, %v440
    %v473 = vadd.f32 %v375, %v441
    %v474 = vadd.f32 %v376, %v442
    %v475 = vadd.f32 %v377, %v443
    %v476 = vadd.f32 %v378, %v444
    %v477 = vadd.f32 %v379, %v445
    %v478 = vadd.f32 %v380, %v446
    %v479 = vadd.f32 %v381, %v447
    %v480 = vadd.f32 %v382, %v448
    %v481 = vadd.f32 %v383, %v449
    %v482 = vadd.f32 %v384, %v450
    %v483 = vadd.f32 %v385, %v451
    %v484 = vadd.f32 %v386, %v452
    %v485 = vadd.f32 %v387, %v453
    %v486 = vadd.f32 %v388, %v454
    %v487 = vadd.f32 %v389, %v455
    %v488 = vadd.f32 %v390, %v456
    %v489 = vadd.f32 %v391, %v457
    %v490 = vadd.f32 %v392, %v458
    %v491 = vadd.f32 %v393, %v459
    %v492 = vadd.f32 %v394, %v460
    %v493 = vadd.f32 %v395, %v461
    %v494 = vadd.f32 %v396, %v462
    %v495 = vadd.f32 %v397, %v463
    %v496 = vadd.f32 %v398, %v464
    %v497 = vadd.f32 %v399, %v465
    %v498 = vadd.f32 %v400, %v466
    %s499 = sld [smem:[#allocation4 + $0x81]]
    %v500 = vld [vmem:[%s106 + $0x1] sm:$0xff]
    %v501 = vld [vmem:[%s106 + $0x9] sm:$0xff]
    %v502 = vld [vmem:[%s106 + $0x19] sm:$0xff]
    %v503 = vld [vmem:[%s106 + $0x21] sm:$0xff]
    %v504 = vld [vmem:[%s106 + $0x31] sm:$0xff]
    %v505 = vld [vmem:[%s106 + $0x39] sm:$0xff]
    %v506 = vld [vmem:[%s106 + $0x49] sm:$0xff]
    %v507 = vld [vmem:[%s106 + $0x51] sm:$0xff]
    %v508 = vld [vmem:[%s106 + $0x61] sm:$0xff]
    %v509 = vld [vmem:[%s106 + $0x69] sm:$0xff]
    %v510 = vld [vmem:[%s106 + $0x79] sm:$0xff]
    %v511 = vld [vmem:[%s106 + $0x81] sm:$0xff]
    %v512 = vld [vmem:[%s106 + $0x91] sm:$0xff]
    %v513 = vld [vmem:[%s106 + $0x99] sm:$0xff]
    %v514 = vld [vmem:[%s106 + $0xa9] sm:$0xff]
    %v515 = vld [vmem:[%s106 + $0xb1] sm:$0xff]
    %v516 = vld [vmem:[%s106 + $0xc1] sm:$0xff]
    %v517 = vld [vmem:[%s106 + $0xc9] sm:$0xff]
    %v518 = vld [vmem:[%s106 + $0xd9] sm:$0xff]
    %v519 = vld [vmem:[%s106 + $0xe1] sm:$0xff]
    %v520 = vld [vmem:[%s106 + $0xf1] sm:$0xff]
    %v521 = vld [vmem:[%s106 + $0xf9] sm:$0xff]
    %v522 = vld [vmem:[%s106 + $0x109] sm:$0xff]
    %v523 = vld [vmem:[%s106 + $0x111] sm:$0xff]
    %v524 = vld [vmem:[%s106 + $0x121] sm:$0xff]
    %v525 = vld [vmem:[%s106 + $0x129] sm:$0xff]
    %v526 = vld [vmem:[%s106 + $0x139] sm:$0xff]
    %v527 = vld [vmem:[%s106 + $0x141] sm:$0xff]
    %v528 = vld [vmem:[%s106 + $0x151] sm:$0xff]
    %v529 = vld [vmem:[%s106 + $0x159] sm:$0xff]
    %v530 = vld [vmem:[%s106 + $0x169] sm:$0xff]
    %v531 = vld [vmem:[%s106 + $0x171] sm:$0xff]
    %v532 = vstv %s499
    %v533 = vmul.f32 %v532, %v500
    %v534 = vmul.f32 %v532, %v501
    %v535 = vmul.f32 %v532, %v502
    %v536 = vmul.f32 %v532, %v503
    %v537 = vmul.f32 %v532, %v504
    %v538 = vmul.f32 %v532, %v505
    %v539 = vmul.f32 %v532, %v506
    %v540 = vmul.f32 %v532, %v507
    %v541 = vmul.f32 %v532, %v508
    %v542 = vmul.f32 %v532, %v509
    %v543 = vmul.f32 %v532, %v510
    %v544 = vmul.f32 %v532, %v511
    %v545 = vmul.f32 %v532, %v512
    %v546 = vmul.f32 %v532, %v513
    %v547 = vmul.f32 %v532, %v514
    %v548 = vmul.f32 %v532, %v515
    %v549 = vmul.f32 %v532, %v516
    %v550 = vmul.f32 %v532, %v517
    %v551 = vmul.f32 %v532, %v518
    %v552 = vmul.f32 %v532, %v519
    %v553 = vmul.f32 %v532, %v520
    %v554 = vmul.f32 %v532, %v521
    %v555 = vmul.f32 %v532, %v522
    %v556 = vmul.f32 %v532, %v523
    %v557 = vmul.f32 %v532, %v524
    %v558 = vmul.f32 %v532, %v525
    %v559 = vmul.f32 %v532, %v526
    %v560 = vmul.f32 %v532, %v527
    %v561 = vmul.f32 %v532, %v528
    %v562 = vmul.f32 %v532, %v529
    %v563 = vmul.f32 %v532, %v530
    %v564 = vmul.f32 %v532, %v531
    %v565 = vadd.f32 %v467, %v533
    %v566 = vadd.f32 %v468, %v534
    %v567 = vadd.f32 %v469, %v535
    %v568 = vadd.f32 %v470, %v536
    %v569 = vadd.f32 %v471, %v537
    %v570 = vadd.f32 %v472, %v538
    %v571 = vadd.f32 %v473, %v539
    %v572 = vadd.f32 %v474, %v540
    %v573 = vadd.f32 %v475, %v541
    %v574 = vadd.f32 %v476, %v542
    %v575 = vadd.f32 %v477, %v543
    %v576 = vadd.f32 %v478, %v544
    %v577 = vadd.f32 %v479, %v545
    %v578 = vadd.f32 %v480, %v546
    %v579 = vadd.f32 %v481, %v547
    %v580 = vadd.f32 %v482, %v548
    %v581 = vadd.f32 %v483, %v549
    %v582 = vadd.f32 %v484, %v550
    %v583 = vadd.f32 %v485, %v551
    %v584 = vadd.f32 %v486, %v552
    %v585 = vadd.f32 %v487, %v553
    %v586 = vadd.f32 %v488, %v554
    %v587 = vadd.f32 %v489, %v555
    %v588 = vadd.f32 %v490, %v556
    %v589 = vadd.f32 %v491, %v557
    %v590 = vadd.f32 %v492, %v558
    %v591 = vadd.f32 %v493, %v559
    %v592 = vadd.f32 %v494, %v560
    %v593 = vadd.f32 %v495, %v561
    %v594 = vadd.f32 %v496, %v562
    %v595 = vadd.f32 %v497, %v563
    %v596 = vadd.f32 %v498, %v564
    %s597 = sld [smem:[#allocation4 + $0x82]]
    %v598 = vld [vmem:[%s106 + $0x2] sm:$0xff]
    %v599 = vld [vmem:[%s106 + $0xa] sm:$0xff]
    %v600 = vld [vmem:[%s106 + $0x1a] sm:$0xff]
    %v601 = vld [vmem:[%s106 + $0x22] sm:$0xff]
    %v602 = vld [vmem:[%s106 + $0x32] sm:$0xff]
    %v603 = vld [vmem:[%s106 + $0x3a] sm:$0xff]
    %v604 = vld [vmem:[%s106 + $0x4a] sm:$0xff]
    %v605 = vld [vmem:[%s106 + $0x52] sm:$0xff]
    %v606 = vld [vmem:[%s106 + $0x62] sm:$0xff]
    %v607 = vld [vmem:[%s106 + $0x6a] sm:$0xff]
    %v608 = vld [vmem:[%s106 + $0x7a] sm:$0xff]
    %v609 = vld [vmem:[%s106 + $0x82] sm:$0xff]
    %v610 = vld [vmem:[%s106 + $0x92] sm:$0xff]
    %v611 = vld [vmem:[%s106 + $0x9a] sm:$0xff]
    %v612 = vld [vmem:[%s106 + $0xaa] sm:$0xff]
    %v613 = vld [vmem:[%s106 + $0xb2] sm:$0xff]
    %v614 = vld [vmem:[%s106 + $0xc2] sm:$0xff]
    %v615 = vld [vmem:[%s106 + $0xca] sm:$0xff]
    %v616 = vld [vmem:[%s106 + $0xda] sm:$0xff]
    %v617 = vld [vmem:[%s106 + $0xe2] sm:$0xff]
    %v618 = vld [vmem:[%s106 + $0xf2] sm:$0xff]
    %v619 = vld [vmem:[%s106 + $0xfa] sm:$0xff]
    %v620 = vld [vmem:[%s106 + $0x10a] sm:$0xff]
    %v621 = vld [vmem:[%s106 + $0x112] sm:$0xff]
    %v622 = vld [vmem:[%s106 + $0x122] sm:$0xff]
    %v623 = vld [vmem:[%s106 + $0x12a] sm:$0xff]
    %v624 = vld [vmem:[%s106 + $0x13a] sm:$0xff]
    %v625 = vld [vmem:[%s106 + $0x142] sm:$0xff]
    %v626 = vld [vmem:[%s106 + $0x152] sm:$0xff]
    %v627 = vld [vmem:[%s106 + $0x15a] sm:$0xff]
    %v628 = vld [vmem:[%s106 + $0x16a] sm:$0xff]
    %v629 = vld [vmem:[%s106 + $0x172] sm:$0xff]
    %v630 = vstv %s597
    %v631 = vmul.f32 %v630, %v598
    %v632 = vmul.f32 %v630, %v599
    %v633 = vmul.f32 %v630, %v600
    %v634 = vmul.f32 %v630, %v601
    %v635 = vmul.f32 %v630, %v602
    %v636 = vmul.f32 %v630, %v603
    %v637 = vmul.f32 %v630, %v604
    %v638 = vmul.f32 %v630, %v605
    %v639 = vmul.f32 %v630, %v606
    %v640 = vmul.f32 %v630, %v607
    %v641 = vmul.f32 %v630, %v608
    %v642 = vmul.f32 %v630, %v609
    %v643 = vmul.f32 %v630, %v610
    %v644 = vmul.f32 %v630, %v611
    %v645 = vmul.f32 %v630, %v612
    %v646 = vmul.f32 %v630, %v613
    %v647 = vmul.f32 %v630, %v614
    %v648 = vmul.f32 %v630, %v615
    %v649 = vmul.f32 %v630, %v616
    %v650 = vmul.f32 %v630, %v617
    %v651 = vmul.f32 %v630, %v618
    %v652 = vmul.f32 %v630, %v619
    %v653 = vmul.f32 %v630, %v620
    %v654 = vmul.f32 %v630, %v621
    %v655 = vmul.f32 %v630, %v622
    %v656 = vmul.f32 %v630, %v623
    %v657 = vmul.f32 %v630, %v624
    %v658 = vmul.f32 %v630, %v625
    %v659 = vmul.f32 %v630, %v626
    %v660 = vmul.f32 %v630, %v627
    %v661 = vmul.f32 %v630, %v628
    %v662 = vmul.f32 %v630, %v629
    %v663 = vadd.f32 %v565, %v631
    %v664 = vadd.f32 %v566, %v632
    %v665 = vadd.f32 %v567, %v633
    %v666 = vadd.f32 %v568, %v634
    %v667 = vadd.f32 %v569, %v635
    %v668 = vadd.f32 %v570, %v636
    %v669 = vadd.f32 %v571, %v637
    %v670 = vadd.f32 %v572, %v638
    %v671 = vadd.f32 %v573, %v639
    %v672 = vadd.f32 %v574, %v640
    %v673 = vadd.f32 %v575, %v641
    %v674 = vadd.f32 %v576, %v642
    %v675 = vadd.f32 %v577, %v643
    %v676 = vadd.f32 %v578, %v644
    %v677 = vadd.f32 %v579, %v645
    %v678 = vadd.f32 %v580, %v646
    %v679 = vadd.f32 %v581, %v647
    %v680 = vadd.f32 %v582, %v648
    %v681 = vadd.f32 %v583, %v649
    %v682 = vadd.f32 %v584, %v650
    %v683 = vadd.f32 %v585, %v651
    %v684 = vadd.f32 %v586, %v652
    %v685 = vadd.f32 %v587, %v653
    %v686 = vadd.f32 %v588, %v654
    %v687 = vadd.f32 %v589, %v655
    %v688 = vadd.f32 %v590, %v656
    %v689 = vadd.f32 %v591, %v657
    %v690 = vadd.f32 %v592, %v658
    %v691 = vadd.f32 %v593, %v659
    %v692 = vadd.f32 %v594, %v660
    %v693 = vadd.f32 %v595, %v661
    %v694 = vadd.f32 %v596, %v662
    %s695 = sld [smem:[#allocation4 + $0x100]]
    %s696 = scalar_lea.vmem [#allocation2], 48
    %v697 = vld [vmem:[%s696] sm:$0xff]
    %v698 = vld [vmem:[%s696 + $0x8] sm:$0xff]
    %v699 = vld [vmem:[%s696 + $0x18] sm:$0xff]
    %v700 = vld [vmem:[%s696 + $0x20] sm:$0xff]
    %v701 = vld [vmem:[%s696 + $0x30] sm:$0xff]
    %v702 = vld [vmem:[%s696 + $0x38] sm:$0xff]
    %v703 = vld [vmem:[%s696 + $0x48] sm:$0xff]
    %v704 = vld [vmem:[%s696 + $0x50] sm:$0xff]
    %v705 = vld [vmem:[%s696 + $0x60] sm:$0xff]
    %v706 = vld [vmem:[%s696 + $0x68] sm:$0xff]
    %v707 = vld [vmem:[%s696 + $0x78] sm:$0xff]
    %v708 = vld [vmem:[%s696 + $0x80] sm:$0xff]
    %v709 = vld [vmem:[%s696 + $0x90] sm:$0xff]
    %v710 = vld [vmem:[%s696 + $0x98] sm:$0xff]
    %v711 = vld [vmem:[%s696 + $0xa8] sm:$0xff]
    %v712 = vld [vmem:[%s696 + $0xb0] sm:$0xff]
    %v713 = vld [vmem:[%s696 + $0xc0] sm:$0xff]
    %v714 = vld [vmem:[%s696 + $0xc8] sm:$0xff]
    %v715 = vld [vmem:[%s696 + $0xd8] sm:$0xff]
    %v716 = vld [vmem:[%s696 + $0xe0] sm:$0xff]
    %v717 = vld [vmem:[%s696 + $0xf0] sm:$0xff]
    %v718 = vld [vmem:[%s696 + $0xf8] sm:$0xff]
    %v719 = vld [vmem:[%s696 + $0x108] sm:$0xff]
    %v720 = vld [vmem:[%s696 + $0x110] sm:$0xff]
    %v721 = vld [vmem:[%s696 + $0x120] sm:$0xff]
    %v722 = vld [vmem:[%s696 + $0x128] sm:$0xff]
    %v723 = vld [vmem:[%s696 + $0x138] sm:$0xff]
    %v724 = vld [vmem:[%s696 + $0x140] sm:$0xff]
    %v725 = vld [vmem:[%s696 + $0x150] sm:$0xff]
    %v726 = vld [vmem:[%s696 + $0x158] sm:$0xff]
    %v727 = vld [vmem:[%s696 + $0x168] sm:$0xff]
    %v728 = vld [vmem:[%s696 + $0x170] sm:$0xff]
    %v729 = vstv %s695
    %v730 = vmul.f32 %v729, %v697
    %v731 = vmul.f32 %v729, %v698
    %v732 = vmul.f32 %v729, %v699
    %v733 = vmul.f32 %v729, %v700
    %v734 = vmul.f32 %v729, %v701
    %v735 = vmul.f32 %v729, %v702
    %v736 = vmul.f32 %v729, %v703
    %v737 = vmul.f32 %v729, %v704
    %v738 = vmul.f32 %v729, %v705
    %v739 = vmul.f32 %v729, %v706
    %v740 = vmul.f32 %v729, %v707
    %v741 = vmul.f32 %v729, %v708
    %v742 = vmul.f32 %v729, %v709
    %v743 = vmul.f32 %v729, %v710
    %v744 = vmul.f32 %v729, %v711
    %v745 = vmul.f32 %v729, %v712
    %v746 = vmul.f32 %v729, %v713
    %v747 = vmul.f32 %v729, %v714
    %v748 = vmul.f32 %v729, %v715
    %v749 = vmul.f32 %v729, %v716
    %v750 = vmul.f32 %v729, %v717
    %v751 = vmul.f32 %v729, %v718
    %v752 = vmul.f32 %v729, %v719
    %v753 = vmul.f32 %v729, %v720
    %v754 = vmul.f32 %v729, %v721
    %v755 = vmul.f32 %v729, %v722
    %v756 = vmul.f32 %v729, %v723
    %v757 = vmul.f32 %v729, %v724
    %v758 = vmul.f32 %v729, %v725
    %v759 = vmul.f32 %v729, %v726
    %v760 = vmul.f32 %v729, %v727
    %v761 = vmul.f32 %v729, %v728
    %v762 = vadd.f32 %v663, %v730
    %v763 = vadd.f32 %v664, %v731
    %v764 = vadd.f32 %v665, %v732
    %v765 = vadd.f32 %v666, %v733
    %v766 = vadd.f32 %v667, %v734
    %v767 = vadd.f32 %v668, %v735
    %v768 = vadd.f32 %v669, %v736
    %v769 = vadd.f32 %v670, %v737
    %v770 = vadd.f32 %v671, %v738
    %v771 = vadd.f32 %v672, %v739
    %v772 = vadd.f32 %v673, %v740
    %v773 = vadd.f32 %v674, %v741
    %v774 = vadd.f32 %v675, %v742
    %v775 = vadd.f32 %v676, %v743
    %v776 = vadd.f32 %v677, %v744
    %v777 = vadd.f32 %v678, %v745
    %v778 = vadd.f32 %v679, %v746
    %v779 = vadd.f32 %v680, %v747
    %v780 = vadd.f32 %v681, %v748
    %v781 = vadd.f32 %v682, %v749
    %v782 = vadd.f32 %v683, %v750
    %v783 = vadd.f32 %v684, %v751
    %v784 = vadd.f32 %v685, %v752
    %v785 = vadd.f32 %v686, %v753
    %v786 = vadd.f32 %v687, %v754
    %v787 = vadd.f32 %v688, %v755
    %v788 = vadd.f32 %v689, %v756
    %v789 = vadd.f32 %v690, %v757
    %v790 = vadd.f32 %v691, %v758
    %v791 = vadd.f32 %v692, %v759
    %v792 = vadd.f32 %v693, %v760
    %v793 = vadd.f32 %v694, %v761
    %s794 = sld [smem:[#allocation4 + $0x101]]
    %v795 = vld [vmem:[%s696 + $0x1] sm:$0xff]
    %v796 = vld [vmem:[%s696 + $0x9] sm:$0xff]
    %v797 = vld [vmem:[%s696 + $0x19] sm:$0xff]
    %v798 = vld [vmem:[%s696 + $0x21] sm:$0xff]
    %v799 = vld [vmem:[%s696 + $0x31] sm:$0xff]
    %v800 = vld [vmem:[%s696 + $0x39] sm:$0xff]
    %v801 = vld [vmem:[%s696 + $0x49] sm:$0xff]
    %v802 = vld [vmem:[%s696 + $0x51] sm:$0xff]
    %v803 = vld [vmem:[%s696 + $0x61] sm:$0xff]
    %v804 = vld [vmem:[%s696 + $0x69] sm:$0xff]
    %v805 = vld [vmem:[%s696 + $0x79] sm:$0xff]
    %v806 = vld [vmem:[%s696 + $0x81] sm:$0xff]
    %v807 = vld [vmem:[%s696 + $0x91] sm:$0xff]
    %v808 = vld [vmem:[%s696 + $0x99] sm:$0xff]
    %v809 = vld [vmem:[%s696 + $0xa9] sm:$0xff]
    %v810 = vld [vmem:[%s696 + $0xb1] sm:$0xff]
    %v811 = vld [vmem:[%s696 + $0xc1] sm:$0xff]
    %v812 = vld [vmem:[%s696 + $0xc9] sm:$0xff]
    %v813 = vld [vmem:[%s696 + $0xd9] sm:$0xff]
    %v814 = vld [vmem:[%s696 + $0xe1] sm:$0xff]
    %v815 = vld [vmem:[%s696 + $0xf1] sm:$0xff]
    %v816 = vld [vmem:[%s696 + $0xf9] sm:$0xff]
    %v817 = vld [vmem:[%s696 + $0x109] sm:$0xff]
    %v818 = vld [vmem:[%s696 + $0x111] sm:$0xff]
    %v819 = vld [vmem:[%s696 + $0x121] sm:$0xff]
    %v820 = vld [vmem:[%s696 + $0x129] sm:$0xff]
    %v821 = vld [vmem:[%s696 + $0x139] sm:$0xff]
    %v822 = vld [vmem:[%s696 + $0x141] sm:$0xff]
    %v823 = vld [vmem:[%s696 + $0x151] sm:$0xff]
    %v824 = vld [vmem:[%s696 + $0x159] sm:$0xff]
    %v825 = vld [vmem:[%s696 + $0x169] sm:$0xff]
    %v826 = vld [vmem:[%s696 + $0x171] sm:$0xff]
    %v827 = vstv %s794
    %v828 = vmul.f32 %v827, %v795
    %v829 = vmul.f32 %v827, %v796
    %v830 = vmul.f32 %v827, %v797
    %v831 = vmul.f32 %v827, %v798
    %v832 = vmul.f32 %v827, %v799
    %v833 = vmul.f32 %v827, %v800
    %v834 = vmul.f32 %v827, %v801
    %v835 = vmul.f32 %v827, %v802
    %v836 = vmul.f32 %v827, %v803
    %v837 = vmul.f32 %v827, %v804
    %v838 = vmul.f32 %v827, %v805
    %v839 = vmul.f32 %v827, %v806
    %v840 = vmul.f32 %v827, %v807
    %v841 = vmul.f32 %v827, %v808
    %v842 = vmul.f32 %v827, %v809
    %v843 = vmul.f32 %v827, %v810
    %v844 = vmul.f32 %v827, %v811
    %v845 = vmul.f32 %v827, %v812
    %v846 = vmul.f32 %v827, %v813
    %v847 = vmul.f32 %v827, %v814
    %v848 = vmul.f32 %v827, %v815
    %v849 = vmul.f32 %v827, %v816
    %v850 = vmul.f32 %v827, %v817
    %v851 = vmul.f32 %v827, %v818
    %v852 = vmul.f32 %v827, %v819
    %v853 = vmul.f32 %v827, %v820
    %v854 = vmul.f32 %v827, %v821
    %v855 = vmul.f32 %v827, %v822
    %v856 = vmul.f32 %v827, %v823
    %v857 = vmul.f32 %v827, %v824
    %v858 = vmul.f32 %v827, %v825
    %v859 = vmul.f32 %v827, %v826
    %v860 = vadd.f32 %v762, %v828
    %v861 = vadd.f32 %v763, %v829
    %v862 = vadd.f32 %v764, %v830
    %v863 = vadd.f32 %v765, %v831
    %v864 = vadd.f32 %v766, %v832
    %v865 = vadd.f32 %v767, %v833
    %v866 = vadd.f32 %v768, %v834
    %v867 = vadd.f32 %v769, %v835
    %v868 = vadd.f32 %v770, %v836
    %v869 = vadd.f32 %v771, %v837
    %v870 = vadd.f32 %v772, %v838
    %v871 = vadd.f32 %v773, %v839
    %v872 = vadd.f32 %v774, %v840
    %v873 = vadd.f32 %v775, %v841
    %v874 = vadd.f32 %v776, %v842
    %v875 = vadd.f32 %v777, %v843
    %v876 = vadd.f32 %v778, %v844
    %v877 = vadd.f32 %v779, %v845
    %v878 = vadd.f32 %v780, %v846
    %v879 = vadd.f32 %v781, %v847
    %v880 = vadd.f32 %v782, %v848
    %v881 = vadd.f32 %v783, %v849
    %v882 = vadd.f32 %v784, %v850
    %v883 = vadd.f32 %v785, %v851
    %v884 = vadd.f32 %v786, %v852
    %v885 = vadd.f32 %v787, %v853
    %v886 = vadd.f32 %v788, %v854
    %v887 = vadd.f32 %v789, %v855
    %v888 = vadd.f32 %v790, %v856
    %v889 = vadd.f32 %v791, %v857
    %v890 = vadd.f32 %v792, %v858
    %v891 = vadd.f32 %v793, %v859
    %s892 = sld [smem:[#allocation4 + $0x102]]
    %v893 = vld [vmem:[%s696 + $0x2] sm:$0xff]
    %v894 = vld [vmem:[%s696 + $0xa] sm:$0xff]
    %v895 = vld [vmem:[%s696 + $0x1a] sm:$0xff]
    %v896 = vld [vmem:[%s696 + $0x22] sm:$0xff]
    %v897 = vld [vmem:[%s696 + $0x32] sm:$0xff]
    %v898 = vld [vmem:[%s696 + $0x3a] sm:$0xff]
    %v899 = vld [vmem:[%s696 + $0x4a] sm:$0xff]
    %v900 = vld [vmem:[%s696 + $0x52] sm:$0xff]
    %v901 = vld [vmem:[%s696 + $0x62] sm:$0xff]
    %v902 = vld [vmem:[%s696 + $0x6a] sm:$0xff]
    %v903 = vld [vmem:[%s696 + $0x7a] sm:$0xff]
    %v904 = vld [vmem:[%s696 + $0x82] sm:$0xff]
    %v905 = vld [vmem:[%s696 + $0x92] sm:$0xff]
    %v906 = vld [vmem:[%s696 + $0x9a] sm:$0xff]
    %v907 = vld [vmem:[%s696 + $0xaa] sm:$0xff]
    %v908 = vld [vmem:[%s696 + $0xb2] sm:$0xff]
    %v909 = vld [vmem:[%s696 + $0xc2] sm:$0xff]
    %v910 = vld [vmem:[%s696 + $0xca] sm:$0xff]
    %v911 = vld [vmem:[%s696 + $0xda] sm:$0xff]
    %v912 = vld [vmem:[%s696 + $0xe2] sm:$0xff]
    %v913 = vld [vmem:[%s696 + $0xf2] sm:$0xff]
    %v914 = vld [vmem:[%s696 + $0xfa] sm:$0xff]
    %v915 = vld [vmem:[%s696 + $0x10a] sm:$0xff]
    %v916 = vld [vmem:[%s696 + $0x112] sm:$0xff]
    %v917 = vld [vmem:[%s696 + $0x122] sm:$0xff]
    %v918 = vld [vmem:[%s696 + $0x12a] sm:$0xff]
    %v919 = vld [vmem:[%s696 + $0x13a] sm:$0xff]
    %v920 = vld [vmem:[%s696 + $0x142] sm:$0xff]
    %v921 = vld [vmem:[%s696 + $0x152] sm:$0xff]
    %v922 = vld [vmem:[%s696 + $0x15a] sm:$0xff]
    %v923 = vld [vmem:[%s696 + $0x16a] sm:$0xff]
    %v924 = vld [vmem:[%s696 + $0x172] sm:$0xff]
    %v925 = vstv %s892
    %v926 = vmul.f32 %v925, %v893
    %v927 = vmul.f32 %v925, %v894
    %v928 = vmul.f32 %v925, %v895
    %v929 = vmul.f32 %v925, %v896
    %v930 = vmul.f32 %v925, %v897
    %v931 = vmul.f32 %v925, %v898
    %v932 = vmul.f32 %v925, %v899
    %v933 = vmul.f32 %v925, %v900
    %v934 = vmul.f32 %v925, %v901
    %v935 = vmul.f32 %v925, %v902
    %v936 = vmul.f32 %v925, %v903
    %v937 = vmul.f32 %v925, %v904
    %v938 = vmul.f32 %v925, %v905
    %v939 = vmul.f32 %v925, %v906
    %v940 = vmul.f32 %v925, %v907
    %v941 = vmul.f32 %v925, %v908
    %v942 = vmul.f32 %v925, %v909
    %v943 = vmul.f32 %v925, %v910
    %v944 = vmul.f32 %v925, %v911
    %v945 = vmul.f32 %v925, %v912
    %v946 = vmul.f32 %v925, %v913
    %v947 = vmul.f32 %v925, %v914
    %v948 = vmul.f32 %v925, %v915
    %v949 = vmul.f32 %v925, %v916
    %v950 = vmul.f32 %v925, %v917
    %v951 = vmul.f32 %v925, %v918
    %v952 = vmul.f32 %v925, %v919
    %v953 = vmul.f32 %v925, %v920
    %v954 = vmul.f32 %v925, %v921
    %v955 = vmul.f32 %v925, %v922
    %v956 = vmul.f32 %v925, %v923
    %v957 = vmul.f32 %v925, %v924
    %v958 = vadd.f32 %v860, %v926
    %v959 = vadd.f32 %v861, %v927
    %v960 = vadd.f32 %v862, %v928
    %v961 = vadd.f32 %v863, %v929
    %v962 = vadd.f32 %v864, %v930
    %v963 = vadd.f32 %v865, %v931
    %v964 = vadd.f32 %v866, %v932
    %v965 = vadd.f32 %v867, %v933
    %v966 = vadd.f32 %v868, %v934
    %v967 = vadd.f32 %v869, %v935
    %v968 = vadd.f32 %v870, %v936
    %v969 = vadd.f32 %v871, %v937
    %v970 = vadd.f32 %v872, %v938
    %v971 = vadd.f32 %v873, %v939
    %v972 = vadd.f32 %v874, %v940
    %v973 = vadd.f32 %v875, %v941
    %v974 = vadd.f32 %v876, %v942
    %v975 = vadd.f32 %v877, %v943
    %v976 = vadd.f32 %v878, %v944
    %v977 = vadd.f32 %v879, %v945
    %v978 = vadd.f32 %v880, %v946
    %v979 = vadd.f32 %v881, %v947
    %v980 = vadd.f32 %v882, %v948
    %v981 = vadd.f32 %v883, %v949
    %v982 = vadd.f32 %v884, %v950
    %v983 = vadd.f32 %v885, %v951
    %v984 = vadd.f32 %v886, %v952
    %v985 = vadd.f32 %v887, %v953
    %v986 = vadd.f32 %v888, %v954
    %v987 = vadd.f32 %v889, %v955
    %v988 = vadd.f32 %v890, %v956
    %v989 = vadd.f32 %v891, %v957
    %s990 = sld [smem:[#allocation3]]
    %v991 = vstv %s990
    %v992 = vadd.f32 %v958, %v991
    %v993 = vadd.f32 %v959, %v991
    %v994 = vadd.f32 %v960, %v991
    %v995 = vadd.f32 %v961, %v991
    %v996 = vadd.f32 %v962, %v991
    %v997 = vadd.f32 %v963, %v991
    %v998 = vadd.f32 %v964, %v991
    %v999 = vadd.f32 %v965, %v991
    %v1000 = vadd.f32 %v966, %v991
    %v1001 = vadd.f32 %v967, %v991
    %v1002 = vadd.f32 %v968, %v991
    %v1003 = vadd.f32 %v969, %v991
    %v1004 = vadd.f32 %v970, %v991
    %v1005 = vadd.f32 %v971, %v991
    %v1006 = vadd.f32 %v972, %v991
    %v1007 = vadd.f32 %v973, %v991
    %v1008 = vadd.f32 %v974, %v991
    %v1009 = vadd.f32 %v975, %v991
    %v1010 = vadd.f32 %v976, %v991
    %v1011 = vadd.f32 %v977, %v991
    %v1012 = vadd.f32 %v978, %v991
    %v1013 = vadd.f32 %v979, %v991
    %v1014 = vadd.f32 %v980, %v991
    %v1015 = vadd.f32 %v981, %v991
    %v1016 = vadd.f32 %v982, %v991
    %v1017 = vadd.f32 %v983, %v991
    %v1018 = vadd.f32 %v984, %v991
    %v1019 = vadd.f32 %v985, %v991
    %v1020 = vadd.f32 %v986, %v991
    %v1021 = vadd.f32 %v987, %v991
    %v1022 = vadd.f32 %v988, %v991
    %v1023 = vadd.f32 %v989, %v991
    %1024 = vst.msk [vmem:[%s3] sm:$0xff] %vm28, %v992
    %1025 = vst.msk [vmem:[%s3 + $0x8] sm:$0xff] %vm28, %v993
    %1026 = vst.msk [vmem:[%s3 + $0x10] sm:$0xff] %vm28, %v994
    %1027 = vst.msk [vmem:[%s3 + $0x18] sm:$0xff] %vm28, %v995
    %1028 = vst.msk [vmem:[%s3 + $0x20] sm:$0xff] %vm28, %v996
    %1029 = vst.msk [vmem:[%s3 + $0x28] sm:$0xff] %vm28, %v997
    %1030 = vst.msk [vmem:[%s3 + $0x30] sm:$0xff] %vm28, %v998
    %1031 = vst.msk [vmem:[%s3 + $0x38] sm:$0xff] %vm28, %v999
    %1032 = vst.msk [vmem:[%s3 + $0x40] sm:$0xff] %vm28, %v1000
    %1033 = vst.msk [vmem:[%s3 + $0x48] sm:$0xff] %vm28, %v1001
    %1034 = vst.msk [vmem:[%s3 + $0x50] sm:$0xff] %vm28, %v1002
    %1035 = vst.msk [vmem:[%s3 + $0x58] sm:$0xff] %vm28, %v1003
    %1036 = vst.msk [vmem:[%s3 + $0x60] sm:$0xff] %vm28, %v1004
    %1037 = vst.msk [vmem:[%s3 + $0x68] sm:$0xff] %vm28, %v1005
    %1038 = vst.msk [vmem:[%s3 + $0x70] sm:$0xff] %vm28, %v1006
    %1039 = vst.msk [vmem:[%s3 + $0x78] sm:$0xff] %vm28, %v1007
    %1040 = vst.msk [vmem:[%s3 + $0x80] sm:$0xff] %vm28, %v1008
    %1041 = vst.msk [vmem:[%s3 + $0x88] sm:$0xff] %vm28, %v1009
    %1042 = vst.msk [vmem:[%s3 + $0x90] sm:$0xff] %vm28, %v1010
    %1043 = vst.msk [vmem:[%s3 + $0x98] sm:$0xff] %vm28, %v1011
    %1044 = vst.msk [vmem:[%s3 + $0xa0] sm:$0xff] %vm28, %v1012
    %1045 = vst.msk [vmem:[%s3 + $0xa8] sm:$0xff] %vm28, %v1013
    %1046 = vst.msk [vmem:[%s3 + $0xb0] sm:$0xff] %vm28, %v1014
    %1047 = vst.msk [vmem:[%s3 + $0xb8] sm:$0xff] %vm28, %v1015
    %1048 = vst.msk [vmem:[%s3 + $0xc0] sm:$0xff] %vm28, %v1016
    %1049 = vst.msk [vmem:[%s3 + $0xc8] sm:$0xff] %vm28, %v1017
    %1050 = vst.msk [vmem:[%s3 + $0xd0] sm:$0xff] %vm28, %v1018
    %1051 = vst.msk [vmem:[%s3 + $0xd8] sm:$0xff] %vm28, %v1019
    %1052 = vst.msk [vmem:[%s3 + $0xe0] sm:$0xff] %vm28, %v1020
    %1053 = vst.msk [vmem:[%s3 + $0xe8] sm:$0xff] %vm28, %v1021
    %1054 = vst.msk [vmem:[%s3 + $0xf0] sm:$0xff] %vm28, %v1022
    %1055 = vst.msk [vmem:[%s3 + $0xf8] sm:$0xff] %vm28, %v1023
    // Predicated region
    $region18: #{tpu_custom_call.1} parent=1 // pred_check
      _
    $region19: #{tpu_custom_call.1} parent=1 // pred_check_branch
      %1057 = sbr.rel (0) target = $region21
    $region20: #{tpu_custom_call.1} parent=1 // pred_region
      _
    $region21: #{tpu_custom_call.1} parent=1 // pred_fallthru
      _
    // Predicated region
    $region22: #{tpu_custom_call.1} parent=1 // pred_check
      _
    $region23: #{tpu_custom_call.1} parent=1 // pred_check_branch
      %1059 = sbr.rel (0) target = $region25
    $region24: #{tpu_custom_call.1} parent=1 // pred_region
      _
    $region25: #{tpu_custom_call.1} parent=1 // pred_fallthru
      _
    %1060 = vsyncpa [#allocation5], 1

</llo_original>
